<compile_context>
chip_gen: v6e
topology: v6e:2x2x1
jax: 0.10.0
libtpu: 0.0.40
codegen_flags: <defaults>
</compile_context>

<pallas_src>
import functools

import jax
import jax.numpy as jnp
from jax.experimental import pallas as pl
from jax.experimental.pallas import tpu as pltpu


def _round_up(a: int, b: int) -> int:
    return (a + b - 1) // b * b


def _cdiv(a: int, b: int) -> int:
    return (a + b - 1) // b


def _pick_tv(v: int, target: int) -> int:
    """Largest lane-aligned (multiple of 128) vocab tile <= target.

    Prefers exact divisors of V so no padded vocab columns exist at all.
    """
    target = max(128, (int(target) // 128) * 128)
    if v % 128 == 0:
        best = 128
        t = 128
        while t <= min(target, v):
            if v % t == 0:
                best = t
            t += 128
        return best
    # Ragged vocab: single padded lane-aligned width (masked inside the kernel).
    return min(target, _round_up(v, 128))


# ---------------------------------------------------------------------------
# Fused kernel: logits staged in the resident output block, online logsumexp,
# final in-place subtraction.  Grid = (row tiles, vocab tiles).
# ---------------------------------------------------------------------------
def _mlm_kernel(x_ref, w_ref, b_ref, o_ref, m_scr, l_scr, *,
                tv, v_total, num_v, mask_tail):
    j = pl.program_id(1)

    # bf16 operands on the MXU, f32 accumulation; bias added in f32.
    logits = jnp.dot(x_ref[...], w_ref[...], preferred_element_type=jnp.float32)
    logits = logits + b_ref[...]

    if mask_tail:
        # Ragged last vocab tile: columns >= v_total come from out-of-bounds
        # (unspecified) data.  Force them to a huge finite negative so they
        # contribute exactly 0 to the normalizer; the caller slices them off.
        cols = j * tv + jax.lax.broadcasted_iota(jnp.int32, logits.shape, 1)
        logits = jnp.where(cols < v_total, logits, jnp.float32(-1e30))

    if num_v == 1:
        # Whole (padded) vocab in one tile: direct log-softmax, full f32 precision,
        # no staging round-trip through the output buffer.
        m = jnp.max(logits, axis=-1, keepdims=True)
        l = jnp.sum(jnp.exp(logits - m), axis=-1, keepdims=True)
        o_ref[...] = (logits - (m + jnp.log(l))).astype(o_ref.dtype)
        return

    @pl.when(j == 0)
    def _():
        m_scr[...] = jnp.full_like(m_scr, -jnp.inf)
        l_scr[...] = jnp.zeros_like(l_scr)

    # Online logsumexp update (f32).
    m_prev = m_scr[...]
    m_new = jnp.maximum(m_prev, jnp.max(logits, axis=-1, keepdims=True))
    l_scr[...] = (l_scr[...] * jnp.exp(m_prev - m_new)
                  + jnp.sum(jnp.exp(logits - m_new), axis=-1, keepdims=True))
    m_scr[...] = m_new

    # Stage this tile's logits into the resident output block (HBM write happens
    # once per row tile, after the correction sweep below).
    start = pl.multiple_of(j * tv, 128)
    o_ref[:, pl.ds(start, tv)] = logits.astype(o_ref.dtype)

    @pl.when(j == num_v - 1)
    def _():
        lse = m_scr[...] + jnp.log(l_scr[...])
        o_ref[...] = (o_ref[...].astype(jnp.float32) - lse).astype(o_ref.dtype)


def masked_language_model(x, w, b, *, tile_m=256, tile_v=2048,
                          out_dtype=jnp.bfloat16, compute_dtype=jnp.bfloat16,
                          vmem_budget_bytes=48 * 1024 * 1024):
    """LogSoftmax(x @ w + b, axis=-1) fused in one Pallas pass.

    x: [B, S, H]; w: [H, V] (transpose of torch Linear.weight); b: [V].
    Returns [B, S, V] log-probabilities in `out_dtype`.
    """
    B, S, H = x.shape
    V = w.shape[1]
    M = B * S

    cdt = jnp.dtype(compute_dtype)
    odt = jnp.dtype(out_dtype)

    # ---- tile selection: lane/sublane aligned, then shrunk to the VMEM budget
    # (budget chosen for v7x's 64 MiB physical VMEM; v5e/v6e have 128 MiB).
    tm = min(_round_up(M, 8), _round_up(int(tile_m), 8))
    tv = _pick_tv(V, tile_v)

    def vmem_need(tm_, tv_):
        v_blk_ = _cdiv(V, tv_) * tv_
        return (2 * tm_ * H * cdt.itemsize          # x (double-buffered)
                + 2 * H * tv_ * cdt.itemsize        # W tile (double-buffered)
                + 2 * tv_ * 4                       # bias tile
                + 2 * tm_ * v_blk_ * odt.itemsize   # resident log-prob block
                + 4 * tm_ * 4)                      # running max / sum-exp scratch

    while vmem_need(tm, tv) > vmem_budget_bytes and tm > 8:
        tm = max(8, (tm // 16) * 8)                 # halve, keep multiple of 8
    while vmem_need(tm, tv) > vmem_budget_bytes and tv > 128:
        tv = max(128, tv - 128)

    num_m = _cdiv(M, tm)
    num_v = _cdiv(V, tv)
    v_blk = num_v * tv                              # output block width (x128)
    mask_tail = (v_blk != V)

    x2 = x.reshape(M, H)
    x2 = x2 if x2.dtype == cdt else x2.astype(cdt)
    w2 = w if w.dtype == cdt else w.astype(cdt)
    b2 = b.reshape(1, V).astype(jnp.float32)

    kernel = functools.partial(_mlm_kernel, tv=tv, v_total=V,
                               num_v=num_v, mask_tail=mask_tail)

    need = vmem_need(tm, tv)
    # Explicit scoped-VMEM limit: enough for the chosen tiles, capped below
    # v7x's 64 MiB physical VMEM (v5e default is only 16 MiB, so be explicit).
    vmem_limit = int(min(max(need + (8 << 20), 32 << 20), 56 << 20))

    out = pl.pallas_call(
        kernel,
        out_shape=jax.ShapeDtypeStruct((M, v_blk), out_dtype),
        grid_spec=pltpu.PrefetchScalarGridSpec(
            num_scalar_prefetch=0,
            grid=(num_m, num_v),
            in_specs=[
                pl.BlockSpec((tm, H), lambda i, j: (i, 0)),   # activations row tile
                pl.BlockSpec((H, tv), lambda i, j: (0, j)),   # streamed weight tile
                pl.BlockSpec((1, tv), lambda i, j: (0, j)),   # bias tile
            ],
            out_specs=pl.BlockSpec((tm, v_blk), lambda i, j: (i, 0)),
            scratch_shapes=[pltpu.VMEM((tm, 1), jnp.float32),   # running max
                            pltpu.VMEM((tm, 1), jnp.float32)],  # running sum-exp
        ),
        compiler_params=pltpu.CompilerParams(
            dimension_semantics=("parallel", "arbitrary"),
            vmem_limit_bytes=vmem_limit),
        cost_estimate=pl.CostEstimate(
            flops=2 * M * H * v_blk,
            transcendentals=M * v_blk,
            bytes_accessed=int(M * H * cdt.itemsize
                               + num_m * H * v_blk * cdt.itemsize  # W re-read per row tile
                               + V * 4
                               + M * v_blk * odt.itemsize)),
    )(x2, w2, b2)

    if v_blk != V:
        # TODO(synk): ragged vocab (V % 128 != 0) pays one extra output copy here.
        out = out[:, :V]
    return out.reshape(B, S, V)


if __name__ == "__main__":
    # Small shapes consistent with the module's forward.
    batch, seq, hidden, vocab_size = 2, 8, 32, 512

    key = jax.random.PRNGKey(0)
    kx, kw, kb = jax.random.split(key, 3)

    # Deterministic parameter init mimicking nn.Linear default:
    # uniform(-1/sqrt(hidden), 1/sqrt(hidden)) for both weight and bias.
    bound = 1.0 / (hidden ** 0.5)
    w = jax.random.uniform(kw, (hidden, vocab_size), jnp.float32, -bound, bound)
    b = jax.random.uniform(kb, (vocab_size,), jnp.float32, -bound, bound)
    x = jax.random.normal(kx, (batch, seq, hidden), jnp.float32)

    # Reference with the same bf16-rounded matmul operands, f32 math.
    xb = x.astype(jnp.bfloat16).astype(jnp.float32)
    wb = w.astype(jnp.bfloat16).astype(jnp.float32)
    ref = jax.nn.log_softmax(xb @ wb + b, axis=-1)

    # bf16 output + bf16-staged logits -> compare with a tolerance of a few bf16 ulps.
    tol = dict(atol=1e-1, rtol=2e-2)

    # 1) Multi-tile streaming path: vocab swept in 4 tiles of 128 (online LSE,
    #    staged logits, final in-place correction).
    out1 = jax.block_until_ready(masked_language_model(x, w, b, tile_v=128))
    assert out1.shape == (batch, seq, vocab_size)
    assert jnp.allclose(out1.astype(jnp.float32), ref, **tol), "mismatch (streamed)"

    # 2) Default tiling: whole vocab fits in one tile -> direct log-softmax path.
    out2 = jax.block_until_ready(masked_language_model(x, w, b))
    assert out2.shape == (batch, seq, vocab_size)
    assert jnp.allclose(out2.astype(jnp.float32), ref, **tol), "mismatch (single tile)"

    # 3) Ragged vocab (V not a multiple of 128): exercises the in-kernel iota mask
    #    (no padded weight copy in HBM) and the trailing slice.
    v3 = 200
    w3, b3 = w[:, :v3], b[:v3]
    ref3 = jax.nn.log_softmax(xb @ wb[:, :v3] + b3, axis=-1)
    out3 = jax.block_until_ready(masked_language_model(x, w3, b3))
    assert out3.shape == (batch, seq, v3)
    assert jnp.allclose(out3.astype(jnp.float32), ref3, **tol), "mismatch (ragged vocab)"

    print("KERNEL_OK")
</pallas_src>

<mosaic_0001>
module attributes {stable_mosaic.version = 11 : i64} {
  func.func @_mlm_kernel(%arg0: i32, %arg1: i32, %arg2: memref<16x32xbf16, #tpu.memory_space<vmem>>, %arg3: memref<32x128xbf16, #tpu.memory_space<vmem>>, %arg4: memref<1x128xf32, #tpu.memory_space<vmem>>, %arg5: memref<16x512xbf16, #tpu.memory_space<vmem>>, %arg6: memref<16x1xf32, #tpu.memory_space<vmem>>, %arg7: memref<16x1xf32, #tpu.memory_space<vmem>>) attributes {dimension_semantics = [#tpu.dimension_semantics<parallel>, #tpu.dimension_semantics<arbitrary>], iteration_bounds = array<i64: 1, 4>, scalar_prefetch = 0 : i64, scratch_operands = 2 : i64, tpu.core_type = #tpu.core_type<tc>, window_params = [{transform_indices = @transform_0, window_bounds = array<i64: 16, 32>}, {transform_indices = @transform_1, window_bounds = array<i64: 32, 128>}, {transform_indices = @transform_2, window_bounds = array<i64: 1, 128>}, {transform_indices = @transform_3, window_bounds = array<i64: 16, 512>}]} {
    %c0 = arith.constant 0 : index
    %c0_0 = arith.constant 0 : index
    %0 = vector.load %arg2[%c0, %c0_0] : memref<16x32xbf16, #tpu.memory_space<vmem>>, vector<16x32xbf16>
    %c0_1 = arith.constant 0 : index
    %c0_2 = arith.constant 0 : index
    %1 = vector.load %arg3[%c0_1, %c0_2] : memref<32x128xbf16, #tpu.memory_space<vmem>>, vector<32x128xbf16>
    %cst = arith.constant dense<0.000000e+00> : vector<16x128xf32>
    %2 = tpu.matmul %0, %1, %cst {dimension_numbers = #tpu.dot_dimension_numbers<[1], [0], [0], [1], [0, 0, 1, 1], [], []>} : vector<16x32xbf16>, vector<32x128xbf16>, vector<16x128xf32> -> vector<16x128xf32>
    %c0_3 = arith.constant 0 : index
    %c0_4 = arith.constant 0 : index
    %3 = vector.load %arg4[%c0_3, %c0_4] : memref<1x128xf32, #tpu.memory_space<vmem>>, vector<1x128xf32>
    %4 = vector.broadcast %3 : vector<1x128xf32> to vector<16x128xf32>
    %5 = arith.addf %2, %4 : vector<16x128xf32>
    %c0_i32 = arith.constant 0 : i32
    %6 = arith.cmpi eq, %arg1, %c0_i32 : i32
    %7 = arith.extui %6 : i1 to i32
    %c0_i32_5 = arith.constant 0 : i32
    %8 = arith.cmpi ne, %7, %c0_i32_5 : i32
    scf.if %8 {
      %cst_18 = arith.constant 0xFF800000 : f32
      %33 = vector.broadcast %cst_18 : f32 to vector<16x1xf32>
      %c0_19 = arith.constant 0 : index
      %c0_20 = arith.constant 0 : index
      %34 = vector.load %arg6[%c0_19, %c0_20] : memref<16x1xf32, #tpu.memory_space<vmem>>, vector<16x1xf32>
      tpu.vector_store %arg6[%c0_19, %c0_20], %33 {strides = array<i32>} : memref<16x1xf32, #tpu.memory_space<vmem>>, vector<16x1xf32>,
      %cst_21 = arith.constant 0.000000e+00 : f32
      %35 = vector.broadcast %cst_21 : f32 to vector<16x1xf32>
      %c0_22 = arith.constant 0 : index
      %c0_23 = arith.constant 0 : index
      %36 = vector.load %arg7[%c0_22, %c0_23] : memref<16x1xf32, #tpu.memory_space<vmem>>, vector<16x1xf32>
      tpu.vector_store %arg7[%c0_22, %c0_23], %35 {strides = array<i32>} : memref<16x1xf32, #tpu.memory_space<vmem>>, vector<16x1xf32>,
    } else {
    }
    %c0_6 = arith.constant 0 : index
    %c0_7 = arith.constant 0 : index
    %9 = vector.load %arg6[%c0_6, %c0_7] : memref<16x1xf32, #tpu.memory_space<vmem>>, vector<16x1xf32>
    %cst_8 = arith.constant dense<0xFF800000> : vector<16xf32>
    %10 = vector.multi_reduction <maximumf>, %5, %cst_8 [1] : vector<16x128xf32> to vector<16xf32>
    %11 = vector.shape_cast %10 : vector<16xf32> to vector<16x1xf32>
    %12 = arith.maximumf %9, %11 : vector<16x1xf32>
    %c0_9 = arith.constant 0 : index
    %c0_10 = arith.constant 0 : index
    %13 = vector.load %arg7[%c0_9, %c0_10] : memref<16x1xf32, #tpu.memory_space<vmem>>, vector<16x1xf32>
    %14 = arith.subf %9, %12 : vector<16x1xf32>
    %15 = math.exp %14 : vector<16x1xf32>
    %16 = arith.mulf %13, %15 : vector<16x1xf32>
    %17 = vector.broadcast %12 : vector<16x1xf32> to vector<16x128xf32>
    %18 = arith.subf %5, %17 : vector<16x128xf32>
    %19 = math.exp %18 : vector<16x128xf32>
    %cst_11 = arith.constant dense<0.000000e+00> : vector<16xf32>
    %20 = vector.multi_reduction <add>, %19, %cst_11 [1] : vector<16x128xf32> to vector<16xf32>
    %21 = vector.shape_cast %20 : vector<16xf32> to vector<16x1xf32>
    %22 = arith.addf %16, %21 : vector<16x1xf32>
    %c0_12 = arith.constant 0 : index
    %c0_13 = arith.constant 0 : index
    %23 = vector.load %arg7[%c0_12, %c0_13] : memref<16x1xf32, #tpu.memory_space<vmem>>, vector<16x1xf32>
    tpu.vector_store %arg7[%c0_12, %c0_13], %22 {strides = array<i32>} : memref<16x1xf32, #tpu.memory_space<vmem>>, vector<16x1xf32>,
    %c0_14 = arith.constant 0 : index
    %c0_15 = arith.constant 0 : index
    %24 = vector.load %arg6[%c0_14, %c0_15] : memref<16x1xf32, #tpu.memory_space<vmem>>, vector<16x1xf32>
    tpu.vector_store %arg6[%c0_14, %c0_15], %12 {strides = array<i32>} : memref<16x1xf32, #tpu.memory_space<vmem>>, vector<16x1xf32>,
    %c128_i32 = arith.constant 128 : i32
    %25 = arith.muli %arg1, %c128_i32 : i32
    %26 = tpu.assume_multiple %25, 128 : i32
    %27 = arith.truncf %5 : vector<16x128xf32> to vector<16x128xbf16>
    %c0_16 = arith.constant 0 : index
    %28 = arith.index_cast %26 : i32 to index
    %29 = vector.load %arg5[%c0_16, %28] : memref<16x512xbf16, #tpu.memory_space<vmem>>, vector<16x128xbf16>
    tpu.vector_store %arg5[%c0_16, %28], %27 {strides = array<i32>} : memref<16x512xbf16, #tpu.memory_space<vmem>>, vector<16x128xbf16>,
    %c3_i32 = arith.constant 3 : i32
    %30 = arith.cmpi eq, %arg1, %c3_i32 : i32
    %31 = arith.extui %30 : i1 to i32
    %c0_i32_17 = arith.constant 0 : i32
    %32 = arith.cmpi ne, %31, %c0_i32_17 : i32
    scf.if %32 {
      %c0_18 = arith.constant 0 : index
      %c0_19 = arith.constant 0 : index
      %33 = vector.load %arg6[%c0_18, %c0_19] : memref<16x1xf32, #tpu.memory_space<vmem>>, vector<16x1xf32>
      %c0_20 = arith.constant 0 : index
      %c0_21 = arith.constant 0 : index
      %34 = vector.load %arg7[%c0_20, %c0_21] : memref<16x1xf32, #tpu.memory_space<vmem>>, vector<16x1xf32>
      %35 = math.log %34 : vector<16x1xf32>
      %36 = arith.addf %33, %35 : vector<16x1xf32>
      %c0_22 = arith.constant 0 : index
      %c0_23 = arith.constant 0 : index
      %37 = vector.load %arg5[%c0_22, %c0_23] : memref<16x512xbf16, #tpu.memory_space<vmem>>, vector<16x512xbf16>
      %38 = arith.extf %37 : vector<16x512xbf16> to vector<16x512xf32>
      %39 = vector.broadcast %36 : vector<16x1xf32> to vector<16x512xf32>
      %40 = arith.subf %38, %39 : vector<16x512xf32>
      %41 = arith.truncf %40 : vector<16x512xf32> to vector<16x512xbf16>
      %c0_24 = arith.constant 0 : index
      %c0_25 = arith.constant 0 : index
      %42 = vector.load %arg5[%c0_24, %c0_25] : memref<16x512xbf16, #tpu.memory_space<vmem>>, vector<16x512xbf16>
      tpu.vector_store %arg5[%c0_24, %c0_25], %41 {strides = array<i32>} : memref<16x512xbf16, #tpu.memory_space<vmem>>, vector<16x512xbf16>,
    } else {
    }
    return
  }
  func.func @transform_0(%arg0: i32, %arg1: i32) -> (i32, i32) {
    %c0_i32 = arith.constant 0 : i32
    %c0_i32_0 = arith.constant 0 : i32
    return %arg0, %c0_i32 : i32, i32
  }
  func.func @transform_1(%arg0: i32, %arg1: i32) -> (i32, i32) {
    %c0_i32 = arith.constant 0 : i32
    %c0_i32_0 = arith.constant 0 : i32
    return %c0_i32, %arg1 : i32, i32
  }
  func.func @transform_2(%arg0: i32, %arg1: i32) -> (i32, i32) {
    %c0_i32 = arith.constant 0 : i32
    %c0_i32_0 = arith.constant 0 : i32
    return %c0_i32, %arg1 : i32, i32
  }
  func.func @transform_3(%arg0: i32, %arg1: i32) -> (i32, i32) {
    %c0_i32 = arith.constant 0 : i32
    %c0_i32_0 = arith.constant 0 : i32
    return %arg0, %c0_i32 : i32, i32
  }
}

</mosaic_0001>

<llo_original>
// kernel: tpu_custom_call.1
$region0: #{tpu_custom_call.1}
  #allocation0 [shape = 'u32[]', space=smem, size = 0x4, offset = 0x4, fixed_abs, tag = 'smem constant byte address 0x4 - core index']
  #allocation1 [shape = 'u32[144,128]{1,0:T(1,128)}', space=vmem, size = 0x12000, scoped, tag = 'internal scratch']
  #allocation2 [shape = 'f32[16,1]{1,0:T(8,128)}', space=vmem, size = 0x2000, scoped, tag = 'scratch operand']
  #allocation3 [shape = 'f32[16,1]{1,0:T(8,128)}', space=vmem, size = 0x2000, scoped, tag = 'scratch operand']
  %s0 = inlined_call_operand.hbm [shape: bf16[16,32], index: 0, kind: input, shape index: {}]
  %s1 = inlined_call_operand.hbm [shape: bf16[32,512], index: 1, kind: input, shape index: {}]
  %s2 = inlined_call_operand.hbm [shape: f32[1,512], index: 2, kind: input, shape index: {}]
  %s3 = inlined_call_operand.hbm [shape: bf16[16,512], index: 3, kind: output, shape index: {}]
  %s4 = sld [smem:[#allocation0]]
  $region65: #{tpu_custom_call.1} parent=0
    _
  %s6 = ssub.s32 1, %s4
  %s7 = scalar_select 0, %s6, %s4
  $region1: #{tpu_custom_call.1} parent=0
    #allocation4 [shape = 'u8[4096]{0}', space=vmem, size = 0x1000, scoped, tag = 'input window, operand 0, single buffered']
    #allocation5 [shape = 's32[2]{0}', space=sflag, size = 0x8, scoped, tag = 'scoped memory for tpu_custom_call.1']
    #allocation6 [shape = 's32[2]{0}', space=sflag, size = 0x8, scoped, tag = 'scoped memory for tpu_custom_call.1']
    #allocation7 [shape = 'u8[16384]{0}', space=vmem, size = 0x4000, scoped, tag = 'input window, operand 1']
    #allocation8 [shape = 's32[2]{0}', space=sflag, size = 0x8, scoped, tag = 'scoped memory for tpu_custom_call.1']
    #allocation9 [shape = 'u8[1024]{0}', space=vmem, size = 0x400, scoped, tag = 'input window, operand 2']
    #allocation10 [shape = 'u8[16384]{0}', space=vmem, size = 0x4000, scoped, tag = 'output window, operand 0, single buffered']
    %8 = vsyncpa [#allocation5], 0
    %9 = vsyncpa [#allocation8], 0
    %s10 = scalar_lea.sflag [#allocation8], 1
    %11 = vsyncpa %s10, 0
    %12 = vsyncpa [#allocation6], 0
    loop: start=0, step=1, limit=6
    $region2: #{tpu_custom_call.1} parent=1 // loop_pre_header
      _
    $region3: #{tpu_custom_call.1} parent=1 // loop_header
      %s14 = sphi 0, %s18
      %p15 = scmp.ge.s32.totalorder %s14, 6
      %s21 = sphi 0, %s33
      %s22 = sphi 0, %s29
      %s23 = sphi 0, %s21
      %s24 = sphi 0, %s22
      %s25 = sphi 0, %s23
      %s26 = sphi 0, %s24
      %s36 = sphi 0, %s38
      %s39 = sphi 0, %s36
      %s40 = sphi 0, %s39
      %s56 = sphi 0, %s40
      %s62 = sphi 0, %s64
      %s65 = sphi 0, %s62
      %s66 = sphi 0, %s65
      %s82 = sphi 0, %s66
      %s88 = sphi 0, %s90
      %s91 = sphi 0, %s88
      %s92 = sphi 0, %s91
      %s108 = sphi 0, %s92
      %s114 = sphi 0, %s116
      %s117 = sphi 0, %s114
      %s118 = sphi 0, %s117
      %s134 = sphi 0, %s118
    $region4: #{tpu_custom_call.1} parent=1 // loop_header_branch
      %17 = sbr.rel (%p15) target = $region8
    $region5: #{tpu_custom_call.1} parent=1 // loop_body
      %s19 = ssub.s32 %s14, 1
      %s20 = ssub.s32 %s14, 2
      %s27 = sadd.s32 1, %s22
      %p28 = scmp.ge.s32.totalorder %s27, 4
      %s29 = scalar_select %p28, 0, %s27
      %s30 = sadd.s32 1, %s21
      %s31 = scalar_select %p28, %s30, %s21
      %p32 = scmp.ge.s32.totalorder %s31, 1
      %s33 = scalar_select %p32, 0, %s31
      %s34 = ssub.s32 %s21, %s33
      %p35 = scmp.eq.s32.totalorder %s34, 0
      %s37 = sadd.s32 %s36, 1
      %s38 = scalar_select %p35, %s36, %s37
      %p41 = pneg %p35
      %p42 = scmp.eq.s32.totalorder %s14, 3
      %p43 = por %p41, %p42
      %p44 = scmp.ne.s32.totalorder %s36, %s39
      %p45 = scmp.eq.s32.totalorder %s14, 0
      %p46 = por %p44, %p45
      %p47 = scmp.ne.s32.totalorder %s36, %s39
      %p48 = scmp.eq.s32.totalorder %s19, 3
      %p49 = por %p47, %p48
      %p50 = scmp.ne.s32.totalorder %s39, %s40
      %p51 = scmp.eq.s32.totalorder %s19, 0
      %p52 = por %p50, %p51
      %p53 = scmp.ne.s32.totalorder %s39, %s40
      %p54 = scmp.eq.s32.totalorder %s20, 3
      %p55 = por %p53, %p54
      %p57 = scmp.ne.s32.totalorder %s40, %s56
      %p58 = scmp.eq.s32.totalorder %s20, 0
      %p59 = por %p57, %p58
      %s60 = ssub.s32 %s22, %s29
      %p61 = scmp.eq.s32.totalorder %s60, 0
      %s63 = sadd.s32 %s62, 1
      %s64 = scalar_select %p61, %s62, %s63
      %p67 = pneg %p61
      %p68 = scmp.eq.s32.totalorder %s14, 3
      %p69 = por %p67, %p68
      %p70 = scmp.ne.s32.totalorder %s62, %s65
      %p71 = scmp.eq.s32.totalorder %s14, 0
      %p72 = por %p70, %p71
      %p73 = scmp.ne.s32.totalorder %s62, %s65
      %p74 = scmp.eq.s32.totalorder %s19, 3
      %p75 = por %p73, %p74
      %p76 = scmp.ne.s32.totalorder %s65, %s66
      %p77 = scmp.eq.s32.totalorder %s19, 0
      %p78 = por %p76, %p77
      %p79 = scmp.ne.s32.totalorder %s65, %s66
      %p80 = scmp.eq.s32.totalorder %s20, 3
      %p81 = por %p79, %p80
      %p83 = scmp.ne.s32.totalorder %s66, %s82
      %p84 = scmp.eq.s32.totalorder %s20, 0
      %p85 = por %p83, %p84
      %s86 = ssub.s32 %s22, %s29
      %p87 = scmp.eq.s32.totalorder %s86, 0
      %s89 = sadd.s32 %s88, 1
      %s90 = scalar_select %p87, %s88, %s89
      %p93 = pneg %p87
      %p94 = scmp.eq.s32.totalorder %s14, 3
      %p95 = por %p93, %p94
      %p96 = scmp.ne.s32.totalorder %s88, %s91
      %p97 = scmp.eq.s32.totalorder %s14, 0
      %p98 = por %p96, %p97
      %p99 = scmp.ne.s32.totalorder %s88, %s91
      %p100 = scmp.eq.s32.totalorder %s19, 3
      %p101 = por %p99, %p100
      %p102 = scmp.ne.s32.totalorder %s91, %s92
      %p103 = scmp.eq.s32.totalorder %s19, 0
      %p104 = por %p102, %p103
      %p105 = scmp.ne.s32.totalorder %s91, %s92
      %p106 = scmp.eq.s32.totalorder %s20, 3
      %p107 = por %p105, %p106
      %p109 = scmp.ne.s32.totalorder %s92, %s108
      %p110 = scmp.eq.s32.totalorder %s20, 0
      %p111 = por %p109, %p110
      %s112 = ssub.s32 %s21, %s33
      %p113 = scmp.eq.s32.totalorder %s112, 0
      %s115 = sadd.s32 %s114, 1
      %s116 = scalar_select %p113, %s114, %s115
      %p119 = pneg %p113
      %p120 = scmp.eq.s32.totalorder %s14, 3
      %p121 = por %p119, %p120
      %p122 = scmp.ne.s32.totalorder %s114, %s117
      %p123 = scmp.eq.s32.totalorder %s14, 0
      %p124 = por %p122, %p123
      %p125 = scmp.ne.s32.totalorder %s114, %s117
      %p126 = scmp.eq.s32.totalorder %s19, 3
      %p127 = por %p125, %p126
      %p128 = scmp.ne.s32.totalorder %s117, %s118
      %p129 = scmp.eq.s32.totalorder %s19, 0
      %p130 = por %p128, %p129
      %p131 = scmp.ne.s32.totalorder %s117, %s118
      %p132 = scmp.eq.s32.totalorder %s20, 3
      %p133 = por %p131, %p132
      %p135 = scmp.ne.s32.totalorder %s118, %s134
      %p136 = scmp.eq.s32.totalorder %s20, 0
      %p137 = por %p135, %p136
      %p138 = scmp.le.s32.totalorder 1, %s14
      %p139 = scmp.lt.s32.totalorder %s14, 5
      %p140 = pnand %p138, %p139
      %p141 = pneg %p140
      // Predicated region
      $region9: #{tpu_custom_call.1} parent=5 // pred_check
        _
      $region10: #{tpu_custom_call.1} parent=5 // pred_check_branch
        %143 = sbr.rel (%p140) target = $region12
      $region11: #{tpu_custom_call.1} parent=5 // pred_region
        %s144 = ssub.s32 %s14, 1
        // Predicated region
        $region13: #{tpu_custom_call.1} parent=11 // pred_check
          %p145 = pneg %p52
        $region14: #{tpu_custom_call.1} parent=11 // pred_check_branch
          %147 = sbr.rel (%p145) target = $region16
        $region15: #{tpu_custom_call.1} parent=11 // pred_region
          %s148 = smul.u32 2, %s23
          %s150 = ssub.s32 128, 128
          %151 = vsyncadd [#allocation5], %s150
          %s152 = smul.addr %s148, 64
          %s153 = scalar_lea.hbm %s0, %s152
          %s154 = sshll.u32 [#allocation4], 4
          %s155 = int_to_ptr.vmem [resolvable:$true] %s154
          %160 = dma.hbm_to_vmem [thread:$0]  %s153, 128, %s155, [#allocation5], 64, 64, 4
        $region16: #{tpu_custom_call.1} parent=11 // pred_fallthru
          _
      $region12: #{tpu_custom_call.1} parent=5 // pred_fallthru
        _
      %p161 = scmp.lt.s32.totalorder %s14, 4
      // Predicated region
      $region17: #{tpu_custom_call.1} parent=5 // pred_check
        %p162 = pneg %p161
      $region18: #{tpu_custom_call.1} parent=5 // pred_check_branch
        %164 = sbr.rel (%p162) target = $region20
      $region19: #{tpu_custom_call.1} parent=5 // pred_region
        // Predicated region
        $region21: #{tpu_custom_call.1} parent=19 // pred_check
          %p165 = pneg %p72
        $region22: #{tpu_custom_call.1} parent=19 // pred_check_branch
          %167 = sbr.rel (%p165) target = $region24
        $region23: #{tpu_custom_call.1} parent=19 // pred_region
          %s168 = sand.u32 %s14, 1
          %s169 = scalar_lea.sflag [#allocation8], %s168
          %s170 = sand.u32 %s62, 1
          %s171 = smul.addr %s170, 16
          %s172 = scalar_lea.vmem [#allocation7], %s171
          %s174 = ssub.s32 256, 256
          %175 = vsyncadd %s169, %s174
          %s176 = smul.addr %s22, 64
          %s177 = scalar_lea.hbm %s1, %s176
          %s178 = sshll.u32 %s172, 4
          %s179 = int_to_ptr.vmem [resolvable:$true] %s178
          %184 = dma.hbm_to_vmem [thread:$0]  %s177, 256, %s179, %s169, 256, 64, 4
        $region24: #{tpu_custom_call.1} parent=19 // pred_fallthru
          _
        // Predicated region
        $region25: #{tpu_custom_call.1} parent=19 // pred_check
          %p185 = pneg %p98
        $region26: #{tpu_custom_call.1} parent=19 // pred_check_branch
          %187 = sbr.rel (%p185) target = $region28
        $region27: #{tpu_custom_call.1} parent=19 // pred_region
          %s188 = sand.u32 %s14, 1
          %s189 = scalar_lea.sflag [#allocation8], %s188
          %s190 = sand.u32 %s88, 1
          %s191 = scalar_lea.vmem [#allocation9], %s190
          %s193 = ssub.s32 16, 16
          %194 = vsyncadd %s189, %s193
          %s195 = smul.addr %s22, 16
          %s196 = scalar_lea.hbm %s2, %s195
          %s198 = sshll.u32 %s191, 4
          %s199 = int_to_ptr.vmem [resolvable:$true] %s198
          %201 = dma.hbm_to_vmem [thread:$0]  %s196, 16, %s199, %s189
        $region28: #{tpu_custom_call.1} parent=19 // pred_fallthru
          _
      $region20: #{tpu_custom_call.1} parent=5 // pred_fallthru
        _
      %p202 = scmp.le.s32.totalorder 1, %s14
      %p203 = scmp.lt.s32.totalorder %s14, 5
      %p204 = pnand %p202, %p203
      %p205 = pneg %p204
      // Predicated region
      $region29: #{tpu_custom_call.1} parent=5 // pred_check
        _
      $region30: #{tpu_custom_call.1} parent=5 // pred_check_branch
        %207 = sbr.rel (%p204) target = $region32
      $region31: #{tpu_custom_call.1} parent=5 // pred_region
        %s208 = ssub.s32 %s14, 1
        // Predicated region
        $region33: #{tpu_custom_call.1} parent=31 // pred_check
          %p209 = pneg %p52
        $region34: #{tpu_custom_call.1} parent=31 // pred_check_branch
          %211 = sbr.rel (%p209) target = $region36
        $region35: #{tpu_custom_call.1} parent=31 // pred_region
          %212 = dma.done [#allocation5], 128
        $region36: #{tpu_custom_call.1} parent=31 // pred_fallthru
          _
        %s213 = sand.u32 %s19, 1
        %s214 = scalar_lea.sflag [#allocation8], %s213
        %s215 = sand.u32 %s65, 1
        %s216 = smul.addr %s215, 16
        %s217 = scalar_lea.vmem [#allocation7], %s216
        // Predicated region
        $region37: #{tpu_custom_call.1} parent=31 // pred_check
          %p218 = pneg %p78
        $region38: #{tpu_custom_call.1} parent=31 // pred_check_branch
          %220 = sbr.rel (%p218) target = $region40
        $region39: #{tpu_custom_call.1} parent=31 // pred_region
          %221 = dma.done %s214, 256
        $region40: #{tpu_custom_call.1} parent=31 // pred_fallthru
          _
        %s222 = sand.u32 %s19, 1
        %s223 = scalar_lea.sflag [#allocation8], %s222
        %s224 = sand.u32 %s91, 1
        %s225 = scalar_lea.vmem [#allocation9], %s224
        // Predicated region
        $region41: #{tpu_custom_call.1} parent=31 // pred_check
          %p226 = pneg %p104
        $region42: #{tpu_custom_call.1} parent=31 // pred_check_branch
          %228 = sbr.rel (%p226) target = $region44
        $region43: #{tpu_custom_call.1} parent=31 // pred_region
          %229 = dma.done %s223, 16
        $region44: #{tpu_custom_call.1} parent=31 // pred_fallthru
          _
        %p230 = pneg %p52
        %p231 = pneg %p49
        %s232 = sand.u32 %s19, 1
        %s233 = scalar_lea.sflag [#allocation8], %s232
        %s234 = sand.u32 %s65, 1
        %s235 = smul.addr %s234, 16
        %s236 = scalar_lea.vmem [#allocation7], %s235
        %p237 = pneg %p78
        %p238 = pneg %p75
        %s239 = sand.u32 %s19, 1
        %s240 = scalar_lea.sflag [#allocation8], %s239
        %s241 = sand.u32 %s91, 1
        %s242 = scalar_lea.vmem [#allocation9], %s241
        %p243 = pneg %p104
        %p244 = pneg %p101
        %p245 = pneg %p130
        %p246 = pneg %p127
        %s247 = smul.u32 2, %s23
        %s248 = smul.u32 2, %s23
        %v250 = vld [vmem:[#allocation4] sm:$0xf]
        %v251 = vld [vmem:[#allocation4 + $0x4] sm:$0xf]
        %v252 = vld [vmem:[%s217] sm:$0xf]
        %v253 = vld [vmem:[%s217 + $0x4] sm:$0xf]
        %v254 = vld [vmem:[%s217 + $0x8] sm:$0xf]
        %v255 = vld [vmem:[%s217 + $0xc] sm:$0xf]
        %v256 = vld [vmem:[%s225] sm:$0x1]
        %v258 = vlaneseq
        %v259 = vshrl.u32 %v258, 7
        %v260 = vsub.s32 0, %v259
        %v261 = vrot.slane %v256, %v260
        %v265 = vunpack.c.l.b16 %v250
        %v266 = vunpack.c.l.b16 %v251
        %v267 = vpack.c.b16 %v266, %v265
        %v272 = vunpack.c.l.b16 %v252
        %v273 = vunpack.c.l.b16 %v253
        %v274 = vunpack.c.l.b16 %v254
        %v275 = vunpack.c.l.b16 %v255
        %v276 = vpack.c.b16 %v273, %v272
        %v277 = vpack.c.b16 %v275, %v274
        %vm280 = vcmask 261120
        %v282 = vsel %vm280, %v267, 0
        %284 = vmatprep.subr.bf16.mxu0 0
        %285 = vmatpush1.bf16.msra.mxu0 0
        %286 = vmatprep.subr.bf16.mxu0 0
        %287 = vmatpush1.bf16.msra.mxu0 0
        %288 = vmatprep.subr.bf16.mxu0 0
        %289 = vmatpush1.bf16.msra.mxu0 0
        %290 = vmatprep.subr.bf16.mxu0 0
        %291 = vmatpush1.bf16.msra.mxu0 0
        %292 = vmatprep.subr.bf16.mxu0 0
        %293 = vmatpush1.bf16.msra.mxu0 0
        %294 = vmatprep.subr.bf16.mxu0 0
        %295 = vmatpush1.bf16.msra.mxu0 0
        %296 = vmatprep.subr.bf16.mxu0 0
        %297 = vmatpush1.bf16.msra.mxu0 %v277
        %298 = vmatprep.subr.bf16.mxu0 0
        %299 = vmatpush1.bf16.msra.mxu0 %v276
        %300 = vmatprep.subr.bf16.mxu0 0
        %301 = vmatpush2.bf16.msra.mxu0 0
        %302 = vmatprep.subr.bf16.mxu0 0
        %303 = vmatpush2.bf16.msra.mxu0 0
        %304 = vmatprep.subr.bf16.mxu0 0
        %305 = vmatpush2.bf16.msra.mxu0 0
        %306 = vmatprep.subr.bf16.mxu0 0
        %307 = vmatpush2.bf16.msra.mxu0 0
        %308 = vmatprep.subr.bf16.mxu0 0
        %309 = vmatpush2.bf16.msra.mxu0 0
        %310 = vmatprep.subr.bf16.mxu0 0
        %311 = vmatpush2.bf16.msra.mxu0 0
        %312 = vmatprep.subr.bf16.mxu0 0
        %313 = vmatpush2.bf16.msra.mxu0 0
        %314 = vmatprep.subr.bf16.mxu0 0
        %315 = vmatpush2.bf16.msra.mxu0 0
        %316 = vmatprep.mubr.bf16.mxu0 0
        %317 = vmatmul.mubr.bf16.gmra.mxu0 %v282
        %v318 = vpop.f32.mrf.mxu0
        %v319 = vadd.f32 %v261, %v318
        %v320 = vpop.f32.mrf.mxu0
        %v321 = vpop.f32.mrf.mxu0
        %v322 = vadd.f32 %v261, %v321
        %v323 = vpop.f32.mrf.mxu0
        %324 = vdwg.mxu0
        %p325 = scmp.eq.s32.totalorder %s24, 0
        // Predicated region
        $region45: #{tpu_custom_call.1} parent=31 // pred_check
          %p326 = pneg %p325
        $region46: #{tpu_custom_call.1} parent=31 // pred_check_branch
          %328 = sbr.rel (%p326) target = $region48
        $region47: #{tpu_custom_call.1} parent=31 // pred_region
          %vm329 = vcmask 7168
          %330 = vst.msk [vmem:[#allocation2] sm:$0xff] %vm329, -inf
          %331 = vst.msk [vmem:[#allocation2 + $0x8] sm:$0xff] %vm329, -inf
          %332 = vst.msk [vmem:[#allocation3] sm:$0xff] %vm329, 0.0
          %333 = vst.msk [vmem:[#allocation3 + $0x8] sm:$0xff] %vm329, 0.0
        $region48: #{tpu_custom_call.1} parent=31 // pred_fallthru
          _
        %v334 = vld [vmem:[#allocation2] sm:$0xff]
        %v335 = vld [vmem:[#allocation2 + $0x8] sm:$0xff]
        %336 = vmax.xlane.f32.xlu0 %v319
        %v337 = vpop.xlane.xlu0 %336
        %338 = vmax.xlane.f32.xlu0 %v322
        %v339 = vpop.xlane.xlu0 %338
        %v340 = vmax.f32 %v334, %v337
        %v341 = vmax.f32 %v335, %v339
        %v342 = vld [vmem:[#allocation3] sm:$0xff]
        %v343 = vld [vmem:[#allocation3 + $0x8] sm:$0xff]
        %v344 = vsub.f32 %v334, %v340
        %v345 = vsub.f32 %v335, %v341
        %v346 = vmul.f32 %v344, 1.442695
        %v347 = vpow.pop %v346
        %v348 = vmul.f32 %v345, 1.442695
        %v349 = vpow.pop %v348
        %v350 = vmul.f32 %v342, %v347
        %v351 = vmul.f32 %v343, %v349
        %353 = vset.pattern.permute.xlu0 0
        %354 = vperm.xlu0 %353, %v340
        %v355 = vpop.permute.xlu0 %354
        %358 = vset.pattern.permute.xlu0 0
        %359 = vperm.xlu0 %358, %v341
        %v360 = vpop.permute.xlu0 %359
        %v362 = vsub.f32 %v319, %v355
        %v363 = vsub.f32 %v322, %v360
        %v364 = vmul.f32 %v362, 1.442695
        %v365 = vpow.pop %v364
        %v366 = vmul.f32 %v363, 1.442695
        %v367 = vpow.pop %v366
        %368 = vadd.xlane.f32.xlu0 %v365
        %v369 = vpop.xlane.xlu0 %368
        %370 = vadd.xlane.f32.xlu0 %v367
        %v371 = vpop.xlane.xlu0 %370
        %v372 = vadd.f32 %v350, %v369
        %v373 = vadd.f32 %v351, %v371
        %vm374 = vcmask 7168
        %375 = vst.msk [vmem:[#allocation3] sm:$0xff] %vm374, %v372
        %376 = vst.msk [vmem:[#allocation3 + $0x8] sm:$0xff] %vm374, %v373
        %377 = vst.msk [vmem:[#allocation2] sm:$0xff] %vm374, %v340
        %378 = vst.msk [vmem:[#allocation2 + $0x8] sm:$0xff] %vm374, %v341
        %s379 = smul.u32 %s24, 128
        %v380 = vpack.c.bf16 %v322, %v319
        %v382 = vunpack.c.l.b16 %v380
        %v383 = vunpack.c.h.b16 %v380
        %v384 = vpack.c.b16 %v382, %v382
        %v385 = vpack.c.b16 %v383, %v383
        %s388 = sshra.s32 %s379, 7
        %s389 = sand.u32 %s379, 127
        %s390 = smul.addr %s388, 4
        %s391 = scalar_lea.vmem [#allocation10], %s390
        %392 = vst [vmem:[%s391] sm:$0xf] %v384
        %393 = vst [vmem:[%s391 + $0x10] sm:$0xf] %v385
        %p394 = scmp.eq.s32.totalorder %s24, 3
        // Predicated region
        $region49: #{tpu_custom_call.1} parent=31 // pred_check
          %p395 = pneg %p394
        $region50: #{tpu_custom_call.1} parent=31 // pred_check_branch
          %397 = sbr.rel (%p395) target = $region52
        $region51: #{tpu_custom_call.1} parent=31 // pred_region
          %v398 = vld [vmem:[#allocation2] sm:$0xff]
          %v399 = vld [vmem:[#allocation2 + $0x8] sm:$0xff]
          %v400 = vld [vmem:[#allocation3] sm:$0xff]
          %v401 = vld [vmem:[#allocation3 + $0x8] sm:$0xff]
          %v402 = vlog2.pop %v400
          %v403 = vmul.f32 %v402, 0.6931472
          %v404 = vlog2.pop %v401
          %v405 = vmul.f32 %v404, 0.6931472
          %v406 = vadd.f32 %v398, %v403
          %v407 = vadd.f32 %v399, %v405
          %v408 = vld [vmem:[#allocation10] sm:$0xff]
          %v409 = vld [vmem:[#allocation10 + $0x8] sm:$0xff]
          %v410 = vld [vmem:[#allocation10 + $0x10] sm:$0xff]
          %v411 = vld [vmem:[#allocation10 + $0x18] sm:$0xff]
          %v412 = vunpack.c.l.bf16 %v408
          %v413 = vunpack.c.h.bf16 %v408
          %v414 = vunpack.c.l.bf16 %v409
          %v415 = vunpack.c.h.bf16 %v409
          %v416 = vunpack.c.l.bf16 %v410
          %v417 = vunpack.c.h.bf16 %v410
          %v418 = vunpack.c.l.bf16 %v411
          %v419 = vunpack.c.h.bf16 %v411
          %421 = vset.pattern.permute.xlu0 0
          %422 = vperm.xlu0 %421, %v406
          %v423 = vpop.permute.xlu0 %422
          %426 = vset.pattern.permute.xlu0 0
          %427 = vperm.xlu0 %426, %v407
          %v428 = vpop.permute.xlu0 %427
          %v430 = vsub.f32 %v412, %v423
          %v431 = vsub.f32 %v413, %v423
          %v432 = vsub.f32 %v414, %v423
          %v433 = vsub.f32 %v415, %v423
          %v434 = vsub.f32 %v416, %v428
          %v435 = vsub.f32 %v417, %v428
          %v436 = vsub.f32 %v418, %v428
          %v437 = vsub.f32 %v419, %v428
          %v438 = vpack.c.bf16 %v434, %v430
          %v439 = vpack.c.bf16 %v435, %v431
          %v440 = vpack.c.bf16 %v436, %v432
          %v441 = vpack.c.bf16 %v437, %v433
          %v446 = vunpack.c.l.b16 %v438
          %v447 = vunpack.c.l.b16 %v439
          %v448 = vunpack.c.l.b16 %v440
          %v449 = vunpack.c.l.b16 %v441
          %v450 = vunpack.c.h.b16 %v438
          %v451 = vunpack.c.h.b16 %v439
          %v452 = vunpack.c.h.b16 %v440
          %v453 = vunpack.c.h.b16 %v441
          %v454 = vpack.c.b16 %v447, %v446
          %v455 = vpack.c.b16 %v449, %v448
          %v456 = vpack.c.b16 %v451, %v450
          %v457 = vpack.c.b16 %v453, %v452
          %462 = vst [vmem:[#allocation10] sm:$0xff] %v454
          %463 = vst [vmem:[#allocation10 + $0x8] sm:$0xff] %v455
          %464 = vst [vmem:[#allocation10 + $0x10] sm:$0xff] %v456
          %465 = vst [vmem:[#allocation10 + $0x18] sm:$0xff] %v457
        $region52: #{tpu_custom_call.1} parent=31 // pred_fallthru
          _
        // Predicated region
        $region53: #{tpu_custom_call.1} parent=31 // pred_check
          %p466 = pneg %p127
        $region54: #{tpu_custom_call.1} parent=31 // pred_check_branch
          %468 = sbr.rel (%p466) target = $region56
        $region55: #{tpu_custom_call.1} parent=31 // pred_region
          %s469 = smul.u32 2, %s23
          %s471 = ssub.s32 512, 512
          %472 = vsyncadd [#allocation6], %s471
          %s473 = smul.addr %s469, 4
          %s474 = smul.addr %s473, 64
          %s475 = scalar_lea.hbm %s3, %s474
          %s476 = sshll.u32 [#allocation10], 4
          %s477 = int_to_ptr.vmem [resolvable:$true] %s476
          %482 = dma.vmem_to_hbm [thread:$0]  %s477, 512, %s475, [#allocation6], 256, 256, 16
        $region56: #{tpu_custom_call.1} parent=31 // pred_fallthru
          _
        // Predicated region
        $region57: #{tpu_custom_call.1} parent=31 // pred_check
          %p483 = pneg %p127
        $region58: #{tpu_custom_call.1} parent=31 // pred_check_branch
          %485 = sbr.rel (%p483) target = $region60
        $region59: #{tpu_custom_call.1} parent=31 // pred_region
          %486 = dma.done [#allocation6], 512
        $region60: #{tpu_custom_call.1} parent=31 // pred_fallthru
          _
      $region32: #{tpu_custom_call.1} parent=5 // pred_fallthru
        _
      %p487 = scmp.le.s32.totalorder 2, %s14
      // Predicated region
      $region61: #{tpu_custom_call.1} parent=5 // pred_check
        %p488 = pneg %p487
      $region62: #{tpu_custom_call.1} parent=5 // pred_check_branch
        %490 = sbr.rel (%p488) target = $region64
      $region63: #{tpu_custom_call.1} parent=5 // pred_region
        %s491 = ssub.s32 %s14, 2
      $region64: #{tpu_custom_call.1} parent=5 // pred_fallthru
        _
    $region6: #{tpu_custom_call.1} parent=1 // loop_footer
      %s18 = sadd.s32 1, %s14
    $region7: #{tpu_custom_call.1} parent=1 // loop_footer_branch
      %13 = sbr.rel target = $region3
    $region8: #{tpu_custom_call.1} parent=1 // loop_exit
      _
    %492 = vsyncpa [#allocation5], 1
    %s493 = scalar_lea.sflag [#allocation5], 1
    %494 = vsyncpa %s493, 1
    %495 = vsyncpa [#allocation8], 1
    %s496 = scalar_lea.sflag [#allocation8], 1
    %497 = vsyncpa %s496, 1
    %498 = vsyncpa [#allocation6], 1
    %s499 = scalar_lea.sflag [#allocation6], 1
    %500 = vsyncpa %s499, 1

</llo_original>
